<compile_context>
chip_gen: v7x
topology: tpu7x:2x2x1
jax: 0.10.0
libtpu: 0.0.40
codegen_flags: <defaults>
</compile_context>

<pallas_src>
import functools

import numpy as np
import jax
import jax.numpy as jnp
from jax.experimental import pallas as pl
from jax.experimental.pallas import tpu as pltpu

EPS = 1e-5  # nn.LayerNorm default


def _round_up(a, b):
    return (a + b - 1) // b * b


def _vmem_budgets():
    """(tile-selection budget, scoped vmem_limit cap) for the local TPU gen."""
    try:
        phys = int(pltpu.get_tpu_info().vmem_capacity_bytes)
    except Exception:
        phys = 64 << 20  # conservative fallback: smallest per-core VMEM (v7x)
    budget = max(phys - (36 << 20), phys // 4)     # ~26 MiB v7x, ~90 MiB v5e/v6e
    limit_cap = max(phys - (12 << 20), 32 << 20)   # leave compiler headroom
    return budget, limit_cap


def prenorm_kernel(x_ref, w_ref, bias_ref, o_ref, y_ref):
    # y_ref: (tm, D) matmul-dtype scratch holding the normalized rows.
    # It is computed once per row tile (at j == 0) and reused for every
    # output-column tile, so the LN VALU work is not paid per j step.
    @pl.when(pl.program_id(1) == 0)
    def _():
        x = x_ref[...].astype(jnp.float32)
        d = x.shape[-1]
        mean = jnp.sum(x, axis=-1, keepdims=True) * (1.0 / d)
        xc = x - mean
        # Two-pass variance: no E[x^2] - mean^2 cancellation.
        var = jnp.sum(xc * xc, axis=-1, keepdims=True) * (1.0 / d)
        y_ref[...] = (xc * jax.lax.rsqrt(var + EPS)).astype(y_ref.dtype)

    # MXU path: matmul-dtype operands, f32 accumulation. gamma/beta are
    # already folded into w_ref / bias_ref by prepare_params.
    out = jnp.dot(y_ref[...], w_ref[...], preferred_element_type=jnp.float32)
    o_ref[...] = (out + bias_ref[...].astype(jnp.float32)).astype(o_ref.dtype)


def prepare_params(gamma, beta, w, bias, *, matmul_dtype=jnp.bfloat16):
    """One-time parameter prep (do this at init, not per forward):
    fold the LayerNorm affine into the Linear, cast the weight for the MXU,
    and lane-pad the output dim so kernel stores are unmasked (>=128 wide).

      (xn * gamma + beta) @ W + b  ==  xn @ (gamma[:, None] * W) + (beta @ W + b)
    """
    D, H = w.shape
    gamma_f = gamma.reshape(-1).astype(jnp.float32)
    beta_f = beta.reshape(-1).astype(jnp.float32)
    w_f = w.astype(jnp.float32)
    bias_f = bias.reshape(1, -1).astype(jnp.float32)

    w_fold = gamma_f[:, None] * w_f
    bias_fold = bias_f + beta_f[None, :] @ w_f

    H_pad = _round_up(max(H, 128), 128)
    if H_pad != H:
        w_fold = jnp.pad(w_fold, ((0, 0), (0, H_pad - H)))
        bias_fold = jnp.pad(bias_fold, ((0, 0), (0, H_pad - H)))
    return w_fold.astype(matmul_dtype), bias_fold, H


def prenorm_linear_prepared(x, w_fold, bias_fold, h_out, *, tm=512, tn=256,
                            out_dtype=None):
    """x: (B, S, D), w_fold: (D, H_pad) folded/cast weight -> (B, S, h_out)."""
    B, S, D = x.shape
    H_pad = w_fold.shape[1]
    R = B * S
    x2 = x.reshape(R, D)                       # free reshape, no HBM pass
    out_dtype = x.dtype if out_dtype is None else out_dtype

    vmem_budget, vmem_cap = _vmem_budgets()

    # Row tile: as large as fits; column tile: lane-dense multiple of 128.
    tm_eff = min(_round_up(tm, 8), _round_up(R, 8))
    if H_pad * D * w_fold.dtype.itemsize <= (4 << 20):
        tn_eff = H_pad                         # whole weight resident, 1 j step
    else:
        tn_eff = min(_round_up(tn, 128), H_pad)

    def vmem_bytes(tm_, tn_):
        return (3 * tm_ * D * x2.dtype.itemsize                    # x tile (<=3 bufs)
                + 2 * D * tn_ * w_fold.dtype.itemsize              # weight tile (2 bufs)
                + 2 * tm_ * tn_ * np.dtype(out_dtype).itemsize     # out tile (2 bufs)
                + 2 * tn_ * 4                                      # bias tile
                + tm_ * D * w_fold.dtype.itemsize)                 # normalized-row cache

    # Trim: shrink tn (keeps the MXU M dim full, only adds j steps over a
    # resident x tile) before halving tm (which re-streams the weight).
    while vmem_bytes(tm_eff, tn_eff) > vmem_budget:
        if tn_eff > 128:
            tn_eff = max(128, (tn_eff // 2) // 128 * 128)
        elif tm_eff > 8:
            tm_eff = max(8, _round_up(tm_eff // 2, 8))
        else:
            break

    grid_i = pl.cdiv(R, tm_eff)
    # Megacore (v7x has 2 TCs): keep >= 2 blocks on the "parallel" row axis.
    if grid_i == 1 and R > 8:
        tm_eff = _round_up(pl.cdiv(R, 2), 8)
        grid_i = pl.cdiv(R, tm_eff)
    grid_j = pl.cdiv(H_pad, tn_eff)

    x_idx = lambda i, j: (i, 0)                # reused across j -> no re-DMA
    x_spec = pl.BlockSpec((tm_eff, D), x_idx)
    if grid_j > 1:
        # Deeper buffering so the next row tile's DMA spans several j steps.
        try:
            x_spec = pl.BlockSpec((tm_eff, D), x_idx,
                                  pipeline_mode=pl.Buffered(3))
        except Exception:
            pass  # older jax: fall back to default double buffering

    vmem_limit = int(min(max(2 * vmem_bytes(tm_eff, tn_eff), 32 << 20), vmem_cap))

    out2 = pl.pallas_call(
        prenorm_kernel,
        out_shape=jax.ShapeDtypeStruct((R, H_pad), out_dtype),
        grid_spec=pltpu.PrefetchScalarGridSpec(
            num_scalar_prefetch=0,
            grid=(grid_i, grid_j),
            in_specs=[
                x_spec,                                            # activation rows
                pl.BlockSpec((D, tn_eff), lambda i, j: (0, j)),    # folded weight cols
                pl.BlockSpec((1, tn_eff), lambda i, j: (0, j)),    # folded bias
            ],
            out_specs=pl.BlockSpec((tm_eff, tn_eff), lambda i, j: (i, j)),
            scratch_shapes=[pltpu.VMEM((tm_eff, D), w_fold.dtype)],
        ),
        compiler_params=pltpu.CompilerParams(
            # j re-reads the per-row-tile cache, so it must stay sequential
            # on one core; i is embarrassingly parallel.
            dimension_semantics=("parallel", "arbitrary"),
            vmem_limit_bytes=vmem_limit,
        ),
    )(x2, w_fold, bias_fold)

    return out2[:, :h_out].reshape(B, S, h_out)


def prenorm_linear(x, gamma, beta, w, bias, *, tm=512, tn=256,
                   matmul_dtype=jnp.bfloat16, out_dtype=None):
    """Fused PreNorm forward: LayerNorm(D) then Linear(D, H)."""
    # TODO(synk): in a real model, call prepare_params once at parameter init
    # (or under jit so XLA caches it) instead of re-folding/casting per call.
    w_fold, bias_fold, H = prepare_params(gamma, beta, w, bias,
                                          matmul_dtype=matmul_dtype)
    return prenorm_linear_prepared(x, w_fold, bias_fold, H,
                                   tm=tm, tn=tn, out_dtype=out_dtype)


def reference(x, gamma, beta, w, bias, matmul_dtype=jnp.bfloat16):
    # Mirrors the kernel's math (f32 two-pass LayerNorm, gamma/beta folded
    # into W/bias, matmul-dtype MXU operands, f32 accumulate) so the
    # comparison validates the kernel itself.
    xf = x.astype(jnp.float32)
    mean = jnp.mean(xf, axis=-1, keepdims=True)
    xc = xf - mean
    var = jnp.mean(xc * xc, axis=-1, keepdims=True)
    xn = xc * jax.lax.rsqrt(var + EPS)
    w_fold = (gamma.reshape(-1, 1).astype(jnp.float32)
              * w.astype(jnp.float32)).astype(matmul_dtype)
    bias_fold = (bias.reshape(1, -1).astype(jnp.float32)
                 + beta.reshape(1, -1).astype(jnp.float32) @ w.astype(jnp.float32))
    out = jnp.dot(xn.astype(matmul_dtype), w_fold,
                  preferred_element_type=jnp.float32) + bias_fold
    return out.astype(x.dtype)


if __name__ == "__main__":
    B, S, D, H = 2, 8, 32, 32

    key = jax.random.PRNGKey(0)
    kx, kw, kb, kg, kbt = jax.random.split(key, 5)

    x = jax.random.normal(kx, (B, S, D), dtype=jnp.float32)

    # nn.LayerNorm(dim) parameters (non-trivial values to exercise the fold).
    gamma = 1.0 + 0.1 * jax.random.normal(kg, (1, D), dtype=jnp.float32)
    beta = 0.1 * jax.random.normal(kbt, (1, D), dtype=jnp.float32)

    # Deterministic parameters for fn = Linear(D, H).
    w = jax.random.normal(kw, (D, H), dtype=jnp.float32) * 0.02
    bias = jax.random.normal(kb, (1, H), dtype=jnp.float32) * 0.02

    out = prenorm_linear(x, gamma, beta, w, bias)
    out = jax.block_until_ready(out)

    ref = reference(x, gamma, beta, w, bias)
    assert out.shape == (B, S, H)
    assert jnp.allclose(out, ref, atol=3e-3, rtol=3e-3), "mismatch vs reference"

    print("KERNEL_OK")
</pallas_src>

<mosaic_0001>
module attributes {stable_mosaic.version = 11 : i64} {
  func.func @prenorm_kernel(%arg0: i32, %arg1: i32, %arg2: memref<8x32xf32, #tpu.memory_space<vmem>>, %arg3: memref<32x128xbf16, #tpu.memory_space<vmem>>, %arg4: memref<1x128xf32, #tpu.memory_space<vmem>>, %arg5: memref<8x128xf32, #tpu.memory_space<vmem>>, %arg6: memref<8x32xbf16, #tpu.memory_space<vmem>>) attributes {dimension_semantics = [#tpu.dimension_semantics<parallel>, #tpu.dimension_semantics<arbitrary>], iteration_bounds = array<i64: 2, 1>, scalar_prefetch = 0 : i64, scratch_operands = 1 : i64, tpu.core_type = #tpu.core_type<tc>, window_params = [{transform_indices = @transform_0, window_bounds = array<i64: 8, 32>}, {transform_indices = @transform_1, window_bounds = array<i64: 32, 128>}, {transform_indices = @transform_2, window_bounds = array<i64: 1, 128>}, {transform_indices = @transform_3, window_bounds = array<i64: 8, 128>}]} {
    %c0_i32 = arith.constant 0 : i32
    %0 = arith.cmpi eq, %arg1, %c0_i32 : i32
    %1 = arith.extui %0 : i1 to i32
    %c0_i32_0 = arith.constant 0 : i32
    %2 = arith.cmpi ne, %1, %c0_i32_0 : i32
    scf.if %2 {
      %c0_8 = arith.constant 0 : index
      %c0_9 = arith.constant 0 : index
      %10 = vector.load %arg2[%c0_8, %c0_9] : memref<8x32xf32, #tpu.memory_space<vmem>>, vector<8x32xf32>
      %cst_10 = arith.constant dense<0.000000e+00> : vector<8xf32>
      %11 = vector.multi_reduction <add>, %10, %cst_10 [1] : vector<8x32xf32> to vector<8xf32>
      %12 = vector.shape_cast %11 : vector<8xf32> to vector<8x1xf32>
      %cst_11 = arith.constant 3.125000e-02 : f32
      %13 = vector.broadcast %cst_11 : f32 to vector<8x1xf32>
      %14 = arith.mulf %12, %13 : vector<8x1xf32>
      %15 = vector.broadcast %14 : vector<8x1xf32> to vector<8x32xf32>
      %16 = arith.subf %10, %15 : vector<8x32xf32>
      %17 = arith.mulf %16, %16 : vector<8x32xf32>
      %cst_12 = arith.constant dense<0.000000e+00> : vector<8xf32>
      %18 = vector.multi_reduction <add>, %17, %cst_12 [1] : vector<8x32xf32> to vector<8xf32>
      %19 = vector.shape_cast %18 : vector<8xf32> to vector<8x1xf32>
      %cst_13 = arith.constant 3.125000e-02 : f32
      %20 = vector.broadcast %cst_13 : f32 to vector<8x1xf32>
      %21 = arith.mulf %19, %20 : vector<8x1xf32>
      %cst_14 = arith.constant 9.99999974E-6 : f32
      %22 = vector.broadcast %cst_14 : f32 to vector<8x1xf32>
      %23 = arith.addf %21, %22 : vector<8x1xf32>
      %24 = math.rsqrt %23 : vector<8x1xf32>
      %25 = vector.broadcast %24 : vector<8x1xf32> to vector<8x32xf32>
      %26 = arith.mulf %16, %25 : vector<8x32xf32>
      %27 = arith.truncf %26 : vector<8x32xf32> to vector<8x32xbf16>
      %c0_15 = arith.constant 0 : index
      %c0_16 = arith.constant 0 : index
      %28 = vector.load %arg6[%c0_15, %c0_16] : memref<8x32xbf16, #tpu.memory_space<vmem>>, vector<8x32xbf16>
      tpu.vector_store %arg6[%c0_15, %c0_16], %27 {strides = array<i32>} : memref<8x32xbf16, #tpu.memory_space<vmem>>, vector<8x32xbf16>,
    } else {
    }
    %c0 = arith.constant 0 : index
    %c0_1 = arith.constant 0 : index
    %3 = vector.load %arg6[%c0, %c0_1] : memref<8x32xbf16, #tpu.memory_space<vmem>>, vector<8x32xbf16>
    %c0_2 = arith.constant 0 : index
    %c0_3 = arith.constant 0 : index
    %4 = vector.load %arg3[%c0_2, %c0_3] : memref<32x128xbf16, #tpu.memory_space<vmem>>, vector<32x128xbf16>
    %cst = arith.constant dense<0.000000e+00> : vector<8x128xf32>
    %5 = tpu.matmul %3, %4, %cst {dimension_numbers = #tpu.dot_dimension_numbers<[1], [0], [0], [1], [0, 0, 1, 1], [], []>} : vector<8x32xbf16>, vector<32x128xbf16>, vector<8x128xf32> -> vector<8x128xf32>
    %c0_4 = arith.constant 0 : index
    %c0_5 = arith.constant 0 : index
    %6 = vector.load %arg4[%c0_4, %c0_5] : memref<1x128xf32, #tpu.memory_space<vmem>>, vector<1x128xf32>
    %7 = vector.broadcast %6 : vector<1x128xf32> to vector<8x128xf32>
    %8 = arith.addf %5, %7 : vector<8x128xf32>
    %c0_6 = arith.constant 0 : index
    %c0_7 = arith.constant 0 : index
    %9 = vector.load %arg5[%c0_6, %c0_7] : memref<8x128xf32, #tpu.memory_space<vmem>>, vector<8x128xf32>
    tpu.vector_store %arg5[%c0_6, %c0_7], %8 {strides = array<i32>} : memref<8x128xf32, #tpu.memory_space<vmem>>, vector<8x128xf32>,
    return
  }
  func.func @transform_0(%arg0: i32, %arg1: i32) -> (i32, i32) {
    %c0_i32 = arith.constant 0 : i32
    %c0_i32_0 = arith.constant 0 : i32
    return %arg0, %c0_i32 : i32, i32
  }
  func.func @transform_1(%arg0: i32, %arg1: i32) -> (i32, i32) {
    %c0_i32 = arith.constant 0 : i32
    %c0_i32_0 = arith.constant 0 : i32
    return %c0_i32, %arg1 : i32, i32
  }
  func.func @transform_2(%arg0: i32, %arg1: i32) -> (i32, i32) {
    %c0_i32 = arith.constant 0 : i32
    %c0_i32_0 = arith.constant 0 : i32
    return %c0_i32, %arg1 : i32, i32
  }
  func.func @transform_3(%arg0: i32, %arg1: i32) -> (i32, i32) {
    %c0_i32 = arith.constant 0 : i32
    return %arg0, %arg1 : i32, i32
  }
}

</mosaic_0001>

<llo_original>
// kernel: tpu_custom_call.1
$region0: #{tpu_custom_call.1}
  #allocation0 [shape = 'u32[]', space=smem, size = 0x4, offset = 0x4, fixed_abs, tag = 'smem constant byte address 0x4 - core index']
  #allocation1 [shape = 'u32[144,128]{1,0:T(1,128)}', space=vmem, size = 0x12000, scoped, tag = 'internal scratch']
  #allocation2 [shape = 'bf16[8,32]{1,0:T(8,128)(2,1)}', space=vmem, size = 0x800, scoped, tag = 'scratch operand']
  %s0 = inlined_call_operand.hbm [shape: f32[16,32], index: 0, kind: input, shape index: {}]
  %s1 = inlined_call_operand.hbm [shape: bf16[32,128], index: 1, kind: input, shape index: {}]
  %s2 = inlined_call_operand.vmem [shape: f32[1,128], index: 2, kind: input, shape index: {}]
  %s3 = inlined_call_operand.hbm [shape: f32[16,128], index: 3, kind: output, shape index: {}]
  %s4 = sld [smem:[#allocation0]]
  $region57: #{tpu_custom_call.1} parent=0
    _
  %s6 = ssub.s32 1, %s4
  %s7 = scalar_select 0, %s6, %s4
  $region1: #{tpu_custom_call.1} parent=0
    #allocation3 [shape = 'u8[8192]{0}', space=vmem, size = 0x2000, scoped, tag = 'input window, operand 0']
    #allocation4 [shape = 's32[2]{0}', space=sflag, size = 0x8, scoped, tag = 'scoped memory for tpu_custom_call.1']
    #allocation5 [shape = 's32[2]{0}', space=sflag, size = 0x8, scoped, tag = 'scoped memory for tpu_custom_call.1']
    #allocation6 [shape = 'u8[8192]{0}', space=vmem, size = 0x2000, scoped, tag = 'input window, operand 1, single buffered']
    #allocation7 [shape = 's32[1]{0}', space=sflag, size = 0x4, scoped, tag = 'scoped memory for tpu_custom_call.1']
    #allocation8 [shape = 'u8[8192]{0}', space=vmem, size = 0x2000, scoped, tag = 'output window, operand 0']
    %8 = vsyncpa [#allocation4], 0
    %s9 = scalar_lea.sflag [#allocation4], 1
    %10 = vsyncpa %s9, 0
    %11 = vsyncpa [#allocation7], 0
    %12 = vsyncpa [#allocation5], 0
    %s13 = scalar_lea.sflag [#allocation5], 1
    %14 = vsyncpa %s13, 0
    loop: start=0, step=1, limit=4
    $region2: #{tpu_custom_call.1} parent=1 // loop_pre_header
      _
    $region3: #{tpu_custom_call.1} parent=1 // loop_header
      %s16 = sphi 0, %s20
      %p17 = scmp.ge.s32.totalorder %s16, 4
      %s23 = sphi 0, %s35
      %s24 = sphi 0, %s31
      %s25 = sphi 0, %s23
      %s26 = sphi 0, %s24
      %s27 = sphi 0, %s25
      %s28 = sphi 0, %s26
      %s38 = sphi 0, %s40
      %s41 = sphi 0, %s38
      %s42 = sphi 0, %s41
      %s58 = sphi 0, %s42
      %s64 = sphi 0, %s66
      %s67 = sphi 0, %s64
      %s68 = sphi 0, %s67
      %s84 = sphi 0, %s68
      %s90 = sphi 0, %s92
      %s93 = sphi 0, %s90
      %s94 = sphi 0, %s93
      %s110 = sphi 0, %s94
      %s118 = sphi 0, %s120
      %s121 = sphi 0, %s118
      %s122 = sphi 0, %s121
      %s138 = sphi 0, %s122
    $region4: #{tpu_custom_call.1} parent=1 // loop_header_branch
      %19 = sbr.rel (%p17) target = $region8
    $region5: #{tpu_custom_call.1} parent=1 // loop_body
      %s21 = ssub.s32 %s16, 1
      %s22 = ssub.s32 %s16, 2
      %s29 = sadd.s32 1, %s24
      %p30 = scmp.ge.s32.totalorder %s29, 1
      %s31 = scalar_select %p30, 0, %s29
      %s32 = sadd.s32 1, %s23
      %s33 = scalar_select %p30, %s32, %s23
      %p34 = scmp.ge.s32.totalorder %s33, 2
      %s35 = scalar_select %p34, 0, %s33
      %s36 = ssub.s32 %s23, %s35
      %p37 = scmp.eq.s32.totalorder %s36, 0
      %s39 = sadd.s32 %s38, 1
      %s40 = scalar_select %p37, %s38, %s39
      %p43 = pneg %p37
      %p44 = scmp.eq.s32.totalorder %s16, 1
      %p45 = por %p43, %p44
      %p46 = scmp.ne.s32.totalorder %s38, %s41
      %p47 = scmp.eq.s32.totalorder %s16, 0
      %p48 = por %p46, %p47
      %p49 = scmp.ne.s32.totalorder %s38, %s41
      %p50 = scmp.eq.s32.totalorder %s21, 1
      %p51 = por %p49, %p50
      %p52 = scmp.ne.s32.totalorder %s41, %s42
      %p53 = scmp.eq.s32.totalorder %s21, 0
      %p54 = por %p52, %p53
      %p55 = scmp.ne.s32.totalorder %s41, %s42
      %p56 = scmp.eq.s32.totalorder %s22, 1
      %p57 = por %p55, %p56
      %p59 = scmp.ne.s32.totalorder %s42, %s58
      %p60 = scmp.eq.s32.totalorder %s22, 0
      %p61 = por %p59, %p60
      %s62 = ssub.s32 %s24, %s31
      %p63 = scmp.eq.s32.totalorder %s62, 0
      %s65 = sadd.s32 %s64, 1
      %s66 = scalar_select %p63, %s64, %s65
      %p69 = pneg %p63
      %p70 = scmp.eq.s32.totalorder %s16, 1
      %p71 = por %p69, %p70
      %p72 = scmp.ne.s32.totalorder %s64, %s67
      %p73 = scmp.eq.s32.totalorder %s16, 0
      %p74 = por %p72, %p73
      %p75 = scmp.ne.s32.totalorder %s64, %s67
      %p76 = scmp.eq.s32.totalorder %s21, 1
      %p77 = por %p75, %p76
      %p78 = scmp.ne.s32.totalorder %s67, %s68
      %p79 = scmp.eq.s32.totalorder %s21, 0
      %p80 = por %p78, %p79
      %p81 = scmp.ne.s32.totalorder %s67, %s68
      %p82 = scmp.eq.s32.totalorder %s22, 1
      %p83 = por %p81, %p82
      %p85 = scmp.ne.s32.totalorder %s68, %s84
      %p86 = scmp.eq.s32.totalorder %s22, 0
      %p87 = por %p85, %p86
      %s88 = ssub.s32 %s24, %s31
      %p89 = scmp.eq.s32.totalorder %s88, 0
      %s91 = sadd.s32 %s90, 1
      %s92 = scalar_select %p89, %s90, %s91
      %p95 = pneg %p89
      %p96 = scmp.eq.s32.totalorder %s16, 1
      %p97 = por %p95, %p96
      %p98 = scmp.ne.s32.totalorder %s90, %s93
      %p99 = scmp.eq.s32.totalorder %s16, 0
      %p100 = por %p98, %p99
      %p101 = scmp.ne.s32.totalorder %s90, %s93
      %p102 = scmp.eq.s32.totalorder %s21, 1
      %p103 = por %p101, %p102
      %p104 = scmp.ne.s32.totalorder %s93, %s94
      %p105 = scmp.eq.s32.totalorder %s21, 0
      %p106 = por %p104, %p105
      %p107 = scmp.ne.s32.totalorder %s93, %s94
      %p108 = scmp.eq.s32.totalorder %s22, 1
      %p109 = por %p107, %p108
      %p111 = scmp.ne.s32.totalorder %s94, %s110
      %p112 = scmp.eq.s32.totalorder %s22, 0
      %p113 = por %p111, %p112
      %s114 = ssub.s32 %s23, %s35
      %s115 = ssub.s32 %s24, %s31
      %s116 = sor.u32 %s114, %s115
      %p117 = scmp.eq.s32.totalorder %s116, 0
      %s119 = sadd.s32 %s118, 1
      %s120 = scalar_select %p117, %s118, %s119
      %p123 = pneg %p117
      %p124 = scmp.eq.s32.totalorder %s16, 1
      %p125 = por %p123, %p124
      %p126 = scmp.ne.s32.totalorder %s118, %s121
      %p127 = scmp.eq.s32.totalorder %s16, 0
      %p128 = por %p126, %p127
      %p129 = scmp.ne.s32.totalorder %s118, %s121
      %p130 = scmp.eq.s32.totalorder %s21, 1
      %p131 = por %p129, %p130
      %p132 = scmp.ne.s32.totalorder %s121, %s122
      %p133 = scmp.eq.s32.totalorder %s21, 0
      %p134 = por %p132, %p133
      %p135 = scmp.ne.s32.totalorder %s121, %s122
      %p136 = scmp.eq.s32.totalorder %s22, 1
      %p137 = por %p135, %p136
      %p139 = scmp.ne.s32.totalorder %s122, %s138
      %p140 = scmp.eq.s32.totalorder %s22, 0
      %p141 = por %p139, %p140
      %p142 = scmp.le.s32.totalorder 1, %s16
      %p143 = scmp.lt.s32.totalorder %s16, 3
      %p144 = pnand %p142, %p143
      %p145 = pneg %p144
      // Predicated region
      $region9: #{tpu_custom_call.1} parent=5 // pred_check
        _
      $region10: #{tpu_custom_call.1} parent=5 // pred_check_branch
        %147 = sbr.rel (%p144) target = $region12
      $region11: #{tpu_custom_call.1} parent=5 // pred_region
        %s148 = ssub.s32 %s16, 1
        // Predicated region
        $region13: #{tpu_custom_call.1} parent=11 // pred_check
          %p149 = pneg %p80
        $region14: #{tpu_custom_call.1} parent=11 // pred_check_branch
          %151 = sbr.rel (%p149) target = $region16
        $region15: #{tpu_custom_call.1} parent=11 // pred_region
          %s153 = ssub.s32 256, 256
          %154 = vsyncadd [#allocation7], %s153
          %s155 = smul.addr %s26, 64
          %s156 = scalar_lea.hbm %s1, %s155
          %s157 = sshll.u32 [#allocation6], 4
          %s158 = int_to_ptr.vmem [resolvable:$true] %s157
          %163 = dma.hbm_to_vmem [thread:$0]  %s156, 256, %s158, [#allocation7], 64, 64, 4
        $region16: #{tpu_custom_call.1} parent=11 // pred_fallthru
          _
        // Predicated region
        $region17: #{tpu_custom_call.1} parent=11 // pred_check
          %p164 = pneg %p106
        $region18: #{tpu_custom_call.1} parent=11 // pred_check_branch
          %166 = sbr.rel (%p164) target = $region20
        $region19: #{tpu_custom_call.1} parent=11 // pred_region
          %p167 = scmp.lt.s32.totalorder %s26, 0
          %s168 = scalar_select %p167, %s26, 0
          %s169 = scalar_lea.vmem %s2, %s168
        $region20: #{tpu_custom_call.1} parent=11 // pred_fallthru
          _
      $region12: #{tpu_custom_call.1} parent=5 // pred_fallthru
        _
      %p170 = scmp.lt.s32.totalorder %s16, 2
      // Predicated region
      $region21: #{tpu_custom_call.1} parent=5 // pred_check
        %p171 = pneg %p170
      $region22: #{tpu_custom_call.1} parent=5 // pred_check_branch
        %173 = sbr.rel (%p171) target = $region24
      $region23: #{tpu_custom_call.1} parent=5 // pred_region
        // Predicated region
        $region25: #{tpu_custom_call.1} parent=23 // pred_check
          %p174 = pneg %p48
        $region26: #{tpu_custom_call.1} parent=23 // pred_check_branch
          %176 = sbr.rel (%p174) target = $region28
        $region27: #{tpu_custom_call.1} parent=23 // pred_region
          %s177 = sand.u32 %s38, 1
          %s178 = scalar_lea.sflag [#allocation4], %s177
          %s179 = sand.u32 %s38, 1
          %s180 = smul.addr %s179, 8
          %s181 = scalar_lea.vmem [#allocation3], %s180
          %s183 = ssub.s32 128, 128
          %184 = vsyncadd %s178, %s183
          %s185 = smul.addr %s23, 128
          %s186 = scalar_lea.hbm %s0, %s185
          %s188 = sshll.u32 %s181, 4
          %s189 = int_to_ptr.vmem [resolvable:$true] %s188
          %191 = dma.hbm_to_vmem [thread:$0]  %s186, 128, %s189, %s178
        $region28: #{tpu_custom_call.1} parent=23 // pred_fallthru
          _
      $region24: #{tpu_custom_call.1} parent=5 // pred_fallthru
        _
      %p192 = scmp.le.s32.totalorder 1, %s16
      %p193 = scmp.lt.s32.totalorder %s16, 3
      %p194 = pnand %p192, %p193
      %p195 = pneg %p194
      // Predicated region
      $region29: #{tpu_custom_call.1} parent=5 // pred_check
        _
      $region30: #{tpu_custom_call.1} parent=5 // pred_check_branch
        %197 = sbr.rel (%p194) target = $region32
      $region31: #{tpu_custom_call.1} parent=5 // pred_region
        %s198 = ssub.s32 %s16, 1
        %s199 = sand.u32 %s41, 1
        %s200 = scalar_lea.sflag [#allocation4], %s199
        %s201 = sand.u32 %s41, 1
        %s202 = smul.addr %s201, 8
        %s203 = scalar_lea.vmem [#allocation3], %s202
        // Predicated region
        $region33: #{tpu_custom_call.1} parent=31 // pred_check
          %p204 = pneg %p54
        $region34: #{tpu_custom_call.1} parent=31 // pred_check_branch
          %206 = sbr.rel (%p204) target = $region36
        $region35: #{tpu_custom_call.1} parent=31 // pred_region
          %207 = dma.done %s200, 128
        $region36: #{tpu_custom_call.1} parent=31 // pred_fallthru
          _
        // Predicated region
        $region37: #{tpu_custom_call.1} parent=31 // pred_check
          %p208 = pneg %p80
        $region38: #{tpu_custom_call.1} parent=31 // pred_check_branch
          %210 = sbr.rel (%p208) target = $region40
        $region39: #{tpu_custom_call.1} parent=31 // pred_region
          %211 = dma.done [#allocation7], 256
        $region40: #{tpu_custom_call.1} parent=31 // pred_fallthru
          _
        %s212 = sand.u32 %s41, 1
        %s213 = scalar_lea.sflag [#allocation4], %s212
        %s214 = sand.u32 %s41, 1
        %s215 = smul.addr %s214, 8
        %s216 = scalar_lea.vmem [#allocation3], %s215
        %p217 = pneg %p54
        %p218 = pneg %p51
        %p219 = pneg %p80
        %p220 = pneg %p77
        %p221 = scmp.lt.s32.totalorder %s26, 0
        %s222 = scalar_select %p221, %s26, 0
        %s223 = scalar_lea.vmem %s2, %s222
        %p224 = pneg %p106
        %p225 = pneg %p103
        %p226 = pneg %p134
        %p227 = pneg %p131
        %s228 = sand.u32 %s121, 1
        %s229 = scalar_lea.sflag [#allocation5], %s228
        %s230 = sand.u32 %s121, 1
        %s231 = smul.addr %s230, 8
        %s232 = scalar_lea.vmem [#allocation8], %s231
        %p233 = scmp.lt.s32.totalorder %s26, 0
        %s234 = scalar_select %p233, %s26, 0
        %s235 = scalar_lea.vmem %s2, %s234
        %p237 = scmp.eq.s32.totalorder %s26, 0
        // Predicated region
        $region41: #{tpu_custom_call.1} parent=31 // pred_check
          %p238 = pneg %p237
        $region42: #{tpu_custom_call.1} parent=31 // pred_check_branch
          %240 = sbr.rel (%p238) target = $region44
        $region43: #{tpu_custom_call.1} parent=31 // pred_region
          %v241 = vld [vmem:[%s203] sm:$0xff]
          %vm242 = vcmask 261120
          %v243 = vsel %vm242, %v241, 0.0
          %244 = vadd.xlane.f32.xlu0 %v243
          %v245 = vpop.xlane.xlu0 %244
          %v246 = vmul.f32 %v245, 0.03125
          %v247 = vsub.f32 %v241, %v246
          %v248 = vmul.f32 %v247, %v247
          %v249 = vsel %vm242, %v248, 0.0
          %250 = vadd.xlane.f32.xlu0 %v249
          %v251 = vpop.xlane.xlu0 %250
          %v252 = vmul.f32 %v251, 0.03125
          %v253 = vadd.f32 %v252, 1e-05
          %v254 = vrsqrt.pop %v253
          %v255 = vmul.f32 %v247, %v254
          %v256 = vpack.c.bf16 %v255, %v255
          %vm257 = vcmask 257024
          %258 = vst.msk [vmem:[#allocation2] sm:$0xf] %vm257, %v256
        $region44: #{tpu_custom_call.1} parent=31 // pred_fallthru
          _
        %v259 = vld [vmem:[#allocation2] sm:$0xf]
        %v260 = vld [vmem:[#allocation6] sm:$0xf]
        %v261 = vld [vmem:[#allocation6 + $0x4] sm:$0xf]
        %v262 = vld [vmem:[#allocation6 + $0x8] sm:$0xf]
        %v263 = vld [vmem:[#allocation6 + $0xc] sm:$0xf]
        %v264 = vld [vmem:[%s235] sm:$0x1]
        %v266 = vlaneseq
        %v267 = vshrl.u32 %v266, 7
        %v268 = vsub.s32 0, %v267
        %v269 = vrot.slane %v264, %v268
        %v275 = vunpack.c.l.b16 %v260
        %v276 = vunpack.c.l.b16 %v261
        %v277 = vunpack.c.l.b16 %v262
        %v278 = vunpack.c.l.b16 %v263
        %v279 = vpack.c.b16 %v276, %v275
        %v280 = vpack.c.b16 %v278, %v277
        %vm283 = vcmask 261120
        %v285 = vsel %vm283, %v259, 0
        %287 = vmatprep.subr.bf16.mxu0 0
        %288 = vmatpush1.bf16.msra.mxu0 %v279
        %289 = vmatprep.subr.bf16.mxu0 0
        %290 = vmatpush1.bf16.msra.mxu0 %v280
        %291 = vmatprep.subr.bf16.mxu0 0
        %292 = vmatpush1.bf16.msra.mxu0 0
        %293 = vmatprep.subr.bf16.mxu0 0
        %294 = vmatpush1.bf16.msra.mxu0 0
        %295 = vmatprep.subr.bf16.mxu0 0
        %296 = vmatpush1.bf16.msra.mxu0 0
        %297 = vmatprep.subr.bf16.mxu0 0
        %298 = vmatpush1.bf16.msra.mxu0 0
        %299 = vmatprep.subr.bf16.mxu0 0
        %300 = vmatpush1.bf16.msra.mxu0 0
        %301 = vmatprep.subr.bf16.mxu0 0
        %302 = vmatpush1.bf16.msra.mxu0 0
        %303 = vmatprep.subr.bf16.mxu0 0
        %304 = vmatpush1.bf16.msra.mxu0 0
        %305 = vmatprep.subr.bf16.mxu0 0
        %306 = vmatpush1.bf16.msra.mxu0 0
        %307 = vmatprep.subr.bf16.mxu0 0
        %308 = vmatpush1.bf16.msra.mxu0 0
        %309 = vmatprep.subr.bf16.mxu0 0
        %310 = vmatpush1.bf16.msra.mxu0 0
        %311 = vmatprep.subr.bf16.mxu0 0
        %312 = vmatpush1.bf16.msra.mxu0 0
        %313 = vmatprep.subr.bf16.mxu0 0
        %314 = vmatpush1.bf16.msra.mxu0 0
        %315 = vmatprep.subr.bf16.mxu0 0
        %316 = vmatpush1.bf16.msra.mxu0 0
        %317 = vmatprep.subr.bf16.mxu0 0
        %318 = vmatpush1.bf16.msra.mxu0 0
        %319 = vmatprep.mubr.bf16.mxu0 0
        %320 = vmatmul.mubr.bf16.gmra.mrb[0].mxu0 %v285
        %v321 = vpop.f32.mrb[0].mxu0
        %v322 = vadd.f32 %v269, %v321
        %v323 = vpop.f32.mrb[0].mxu0
        %v324 = vpop.f32.mrb[0].mxu0
        %v325 = vpop.f32.mrb[0].mxu0
        %326 = vdwg.mxu0
        %327 = vst [vmem:[%s232] sm:$0xff] %v322
        %s328 = sand.u32 %s121, 1
        %s329 = scalar_lea.sflag [#allocation5], %s328
        %s330 = sand.u32 %s121, 1
        %s331 = smul.addr %s330, 8
        %s332 = scalar_lea.vmem [#allocation8], %s331
        // Predicated region
        $region45: #{tpu_custom_call.1} parent=31 // pred_check
          %p333 = pneg %p131
        $region46: #{tpu_custom_call.1} parent=31 // pred_check_branch
          %335 = sbr.rel (%p333) target = $region48
        $region47: #{tpu_custom_call.1} parent=31 // pred_region
          %s337 = ssub.s32 128, 128
          %338 = vsyncadd %s329, %s337
          %s339 = sadd.s32 %s26, %s25
          %s340 = smul.addr %s339, 128
          %s341 = scalar_lea.hbm %s3, %s340
          %s343 = sshll.u32 %s332, 4
          %s344 = int_to_ptr.vmem [resolvable:$true] %s343
          %346 = dma.vmem_to_hbm [thread:$0]  %s344, 128, %s341, %s329
        $region48: #{tpu_custom_call.1} parent=31 // pred_fallthru
          _
      $region32: #{tpu_custom_call.1} parent=5 // pred_fallthru
        _
      %p347 = scmp.le.s32.totalorder 2, %s16
      // Predicated region
      $region49: #{tpu_custom_call.1} parent=5 // pred_check
        %p348 = pneg %p347
      $region50: #{tpu_custom_call.1} parent=5 // pred_check_branch
        %350 = sbr.rel (%p348) target = $region52
      $region51: #{tpu_custom_call.1} parent=5 // pred_region
        %s351 = ssub.s32 %s16, 2
        // Predicated region
        $region53: #{tpu_custom_call.1} parent=51 // pred_check
          %p352 = pneg %p137
        $region54: #{tpu_custom_call.1} parent=51 // pred_check_branch
          %354 = sbr.rel (%p352) target = $region56
        $region55: #{tpu_custom_call.1} parent=51 // pred_region
          %s355 = sand.u32 %s122, 1
          %s356 = scalar_lea.sflag [#allocation5], %s355
          %s357 = sand.u32 %s122, 1
          %s358 = smul.addr %s357, 8
          %s359 = scalar_lea.vmem [#allocation8], %s358
          %360 = dma.done %s356, 128
        $region56: #{tpu_custom_call.1} parent=51 // pred_fallthru
          _
      $region52: #{tpu_custom_call.1} parent=5 // pred_fallthru
        _
    $region6: #{tpu_custom_call.1} parent=1 // loop_footer
      %s20 = sadd.s32 1, %s16
    $region7: #{tpu_custom_call.1} parent=1 // loop_footer_branch
      %15 = sbr.rel target = $region3
    $region8: #{tpu_custom_call.1} parent=1 // loop_exit
      _
    %361 = vsyncpa [#allocation4], 1
    %s362 = scalar_lea.sflag [#allocation4], 1
    %363 = vsyncpa %s362, 1
    %364 = vsyncpa [#allocation7], 1
    %365 = vsyncpa [#allocation5], 1
    %s366 = scalar_lea.sflag [#allocation5], 1
    %367 = vsyncpa %s366, 1

</llo_original>
